<compile_context>
chip_gen: v7x
topology: tpu7x:2x2x1
jax: 0.10.0
libtpu: 0.0.40
codegen_flags: <defaults>
</compile_context>

<pallas_src>
import jax
import jax.numpy as jnp
from jax.experimental import pallas as pl
from jax.experimental.pallas import tpu as pltpu

EPS = 1e-5  # PyTorch nn.LayerNorm default


def qnorm_kernel(x_ref, w_ref, b_ref, o_ref):
    x = x_ref[...]            # (row_tile, D) f32 (real rows and imag rows mixed)
    w = w_ref[...]            # (1, D), broadcasts over rows
    b = b_ref[...]
    inv_d = 1.0 / x.shape[-1]
    s1 = jnp.sum(x, axis=-1, keepdims=True)
    s2 = jnp.sum(x * x, axis=-1, keepdims=True)
    mu = s1 * inv_d
    var = s2 * inv_d - mu * mu            # biased variance, single fused pass
    inv = jax.lax.rsqrt(var + EPS)
    o_ref[...] = (x - mu) * inv * w + b


def _pick_row_tile(rows, d, vmem_budget_bytes, max_row_tile):
    # One tiled input + one tiled output, double-buffered, f32.
    bytes_per_row = 2 * 2 * d * 4
    rt = max(8, vmem_budget_bytes // bytes_per_row)
    rt = int(min(rt, max_row_tile))
    # Keep at least 2 grid steps when there are enough rows (v7x megacore).
    if rows // 2 >= 8:
        rt = min(rt, (rows // 2 // 8) * 8)
    if rt >= rows:
        return rows                       # single full-extent block
    return max(8, (rt // 8) * 8)          # multiple of 8 (sublane constraint)


def qnorm(x_complex, weight, bias, *,
          vmem_budget_bytes=24 * 1024 * 1024, max_row_tile=1024):
    """x_complex: complex64 array of shape (..., embed_dim)."""
    orig_shape = x_complex.shape
    D = orig_shape[-1]

    xr = jnp.real(x_complex).reshape(-1, D).astype(jnp.float32)
    xi = jnp.imag(x_complex).reshape(-1, D).astype(jnp.float32)
    R = xr.shape[0]
    xs = jnp.concatenate([xr, xi], axis=0)    # (2R, D): real rows then imag rows
    rows = 2 * R

    rt = _pick_row_tile(rows, D, vmem_budget_bytes, max_row_tile)
    rows_p = ((rows + rt - 1) // rt) * rt
    if rows_p != rows:
        # Zero-padded rows are harmless (var=0 -> rsqrt(eps) finite) and sliced off.
        xs = jnp.pad(xs, ((0, rows_p - rows), (0, 0)))

    w2 = weight.reshape(1, D).astype(jnp.float32)
    b2 = bias.reshape(1, D).astype(jnp.float32)

    grid = (rows_p // rt,)
    row_spec = pl.BlockSpec((rt, D), lambda i: (i, 0))
    par_spec = pl.BlockSpec((1, D), lambda i: (0, 0))

    out = pl.pallas_call(
        qnorm_kernel,
        out_shape=jax.ShapeDtypeStruct((rows_p, D), jnp.float32),
        grid_spec=pltpu.PrefetchScalarGridSpec(
            num_scalar_prefetch=0,
            grid=grid,
            in_specs=[row_spec, par_spec, par_spec],
            out_specs=row_spec,
        ),
        compiler_params=pltpu.CompilerParams(
            dimension_semantics=("parallel",),
            vmem_limit_bytes=48 * 1024 * 1024,
        ),
    )(xs, w2, b2)

    out_r = out[:R]
    out_i = out[R:rows]
    result = jax.lax.complex(out_r, out_i)
    return result.reshape(orig_shape)


def _layernorm_ref(x, w, b):
    mu = jnp.mean(x, axis=-1, keepdims=True)
    xc = x - mu
    var = jnp.mean(xc * xc, axis=-1, keepdims=True)
    return xc * jax.lax.rsqrt(var + EPS) * w + b


if __name__ == "__main__":
    batch, seq, embed_dim = 2, 8, 32

    key = jax.random.PRNGKey(0)
    kr, ki = jax.random.split(key)
    x_real = jax.random.normal(kr, (batch, seq, embed_dim), dtype=jnp.float32)
    x_imag = jax.random.normal(ki, (batch, seq, embed_dim), dtype=jnp.float32)
    x = jax.lax.complex(x_real, x_imag)  # complex64 input

    # PyTorch LayerNorm init: weight=1, bias=0.
    weight = jnp.ones((embed_dim,), dtype=jnp.float32)
    bias = jnp.zeros((embed_dim,), dtype=jnp.float32)

    out = qnorm(x, weight, bias)
    out = jax.block_until_ready(out)

    # Sanity check vs. pure-JAX reference (two-pass LayerNorm).
    ref = jax.lax.complex(
        _layernorm_ref(x_real, weight, bias),
        _layernorm_ref(x_imag, weight, bias),
    )
    assert out.shape == x.shape and out.dtype == jnp.complex64
    assert jnp.allclose(out, ref, atol=1e-5, rtol=1e-5)

    print("KERNEL_OK")
</pallas_src>

<mosaic_0001>
module attributes {stable_mosaic.version = 11 : i64} {
  func.func @qnorm_kernel(%arg0: i32, %arg1: memref<16x32xf32, #tpu.memory_space<vmem>>, %arg2: memref<1x32xf32, #tpu.memory_space<vmem>>, %arg3: memref<1x32xf32, #tpu.memory_space<vmem>>, %arg4: memref<16x32xf32, #tpu.memory_space<vmem>>) attributes {dimension_semantics = [#tpu.dimension_semantics<parallel>], iteration_bounds = array<i64: 2>, scalar_prefetch = 0 : i64, scratch_operands = 0 : i64, tpu.core_type = #tpu.core_type<tc>, window_params = [{transform_indices = @transform_0, window_bounds = array<i64: 16, 32>}, {pipeline_mode = #tpu.pipeline_mode<synchronous>, transform_indices = @transform_1, window_bounds = array<i64: 1, 32>}, {pipeline_mode = #tpu.pipeline_mode<synchronous>, transform_indices = @transform_2, window_bounds = array<i64: 1, 32>}, {transform_indices = @transform_3, window_bounds = array<i64: 16, 32>}]} {
    %c0 = arith.constant 0 : index
    %c0_0 = arith.constant 0 : index
    %0 = vector.load %arg1[%c0, %c0_0] : memref<16x32xf32, #tpu.memory_space<vmem>>, vector<16x32xf32>
    %c0_1 = arith.constant 0 : index
    %c0_2 = arith.constant 0 : index
    %1 = vector.load %arg2[%c0_1, %c0_2] : memref<1x32xf32, #tpu.memory_space<vmem>>, vector<1x32xf32>
    %c0_3 = arith.constant 0 : index
    %c0_4 = arith.constant 0 : index
    %2 = vector.load %arg3[%c0_3, %c0_4] : memref<1x32xf32, #tpu.memory_space<vmem>>, vector<1x32xf32>
    %cst = arith.constant dense<0.000000e+00> : vector<16xf32>
    %3 = vector.multi_reduction <add>, %0, %cst [1] : vector<16x32xf32> to vector<16xf32>
    %4 = vector.shape_cast %3 : vector<16xf32> to vector<16x1xf32>
    %5 = arith.mulf %0, %0 : vector<16x32xf32>
    %cst_5 = arith.constant dense<0.000000e+00> : vector<16xf32>
    %6 = vector.multi_reduction <add>, %5, %cst_5 [1] : vector<16x32xf32> to vector<16xf32>
    %7 = vector.shape_cast %6 : vector<16xf32> to vector<16x1xf32>
    %cst_6 = arith.constant 3.125000e-02 : f32
    %8 = vector.broadcast %cst_6 : f32 to vector<16x1xf32>
    %9 = arith.mulf %4, %8 : vector<16x1xf32>
    %cst_7 = arith.constant 3.125000e-02 : f32
    %10 = vector.broadcast %cst_7 : f32 to vector<16x1xf32>
    %11 = arith.mulf %7, %10 : vector<16x1xf32>
    %12 = arith.mulf %9, %9 : vector<16x1xf32>
    %13 = arith.subf %11, %12 : vector<16x1xf32>
    %cst_8 = arith.constant 9.99999974E-6 : f32
    %14 = vector.broadcast %cst_8 : f32 to vector<16x1xf32>
    %15 = arith.addf %13, %14 : vector<16x1xf32>
    %16 = math.rsqrt %15 : vector<16x1xf32>
    %17 = vector.broadcast %9 : vector<16x1xf32> to vector<16x32xf32>
    %18 = arith.subf %0, %17 : vector<16x32xf32>
    %19 = vector.broadcast %16 : vector<16x1xf32> to vector<16x32xf32>
    %20 = arith.mulf %18, %19 : vector<16x32xf32>
    %21 = vector.broadcast %1 : vector<1x32xf32> to vector<16x32xf32>
    %22 = arith.mulf %20, %21 : vector<16x32xf32>
    %23 = vector.broadcast %2 : vector<1x32xf32> to vector<16x32xf32>
    %24 = arith.addf %22, %23 : vector<16x32xf32>
    %c0_9 = arith.constant 0 : index
    %c0_10 = arith.constant 0 : index
    %25 = vector.load %arg4[%c0_9, %c0_10] : memref<16x32xf32, #tpu.memory_space<vmem>>, vector<16x32xf32>
    tpu.vector_store %arg4[%c0_9, %c0_10], %24 {strides = array<i32>} : memref<16x32xf32, #tpu.memory_space<vmem>>, vector<16x32xf32>,
    return
  }
  func.func @transform_0(%arg0: i32) -> (i32, i32) {
    %c0_i32 = arith.constant 0 : i32
    %c0_i32_0 = arith.constant 0 : i32
    return %arg0, %c0_i32 : i32, i32
  }
  func.func @transform_1(%arg0: i32) -> (i32, i32) {
    %c0_i32 = arith.constant 0 : i32
    %c0_i32_0 = arith.constant 0 : i32
    %c0_i32_1 = arith.constant 0 : i32
    return %c0_i32, %c0_i32_0 : i32, i32
  }
  func.func @transform_2(%arg0: i32) -> (i32, i32) {
    %c0_i32 = arith.constant 0 : i32
    %c0_i32_0 = arith.constant 0 : i32
    %c0_i32_1 = arith.constant 0 : i32
    return %c0_i32, %c0_i32_0 : i32, i32
  }
  func.func @transform_3(%arg0: i32) -> (i32, i32) {
    %c0_i32 = arith.constant 0 : i32
    %c0_i32_0 = arith.constant 0 : i32
    return %arg0, %c0_i32 : i32, i32
  }
}

</mosaic_0001>

<llo_original>
// kernel: tpu_custom_call.1
$region0: #{tpu_custom_call.1}
  #allocation0 [shape = 'u32[]', space=smem, size = 0x4, offset = 0x4, fixed_abs, tag = 'smem constant byte address 0x4 - core index']
  #allocation1 [shape = 'u32[144,128]{1,0:T(1,128)}', space=vmem, size = 0x12000, scoped, tag = 'internal scratch']
  %s0 = inlined_call_operand.hbm [shape: f32[32,32], index: 0, kind: input, shape index: {}]
  %s1 = inlined_call_operand.vmem [shape: f32[1,32], index: 1, kind: input, shape index: {}]
  %s2 = inlined_call_operand.vmem [shape: f32[1,32], index: 2, kind: input, shape index: {}]
  %s3 = inlined_call_operand.hbm [shape: f32[32,32], index: 3, kind: output, shape index: {}]
  %s4 = sld [smem:[#allocation0]]
  $region49: #{tpu_custom_call.1} parent=0
    _
  %s6 = ssub.s32 1, %s4
  %s7 = scalar_select 0, %s6, %s4
  $region1: #{tpu_custom_call.1} parent=0
    #allocation2 [shape = 'u8[16384]{0}', space=vmem, size = 0x4000, scoped, tag = 'input window, operand 0']
    #allocation3 [shape = 's32[2]{0}', space=sflag, size = 0x8, scoped, tag = 'scoped memory for tpu_custom_call.1']
    #allocation4 [shape = 's32[2]{0}', space=sflag, size = 0x8, scoped, tag = 'scoped memory for tpu_custom_call.1']
    #allocation5 [shape = 'u8[16384]{0}', space=vmem, size = 0x4000, scoped, tag = 'output window, operand 0']
    %8 = vsyncpa [#allocation3], 0
    %s9 = scalar_lea.sflag [#allocation3], 1
    %10 = vsyncpa %s9, 0
    %11 = vsyncpa [#allocation4], 0
    %s12 = scalar_lea.sflag [#allocation4], 1
    %13 = vsyncpa %s12, 0
    loop: start=0, step=1, limit=4
    $region2: #{tpu_custom_call.1} parent=1 // loop_pre_header
      _
    $region3: #{tpu_custom_call.1} parent=1 // loop_header
      %s15 = sphi 0, %s19
      %p16 = scmp.ge.s32.totalorder %s15, 4
      %s25 = sphi 0, %s27
      %s28 = sphi 0, %s25
      %s29 = sphi 0, %s28
      %s45 = sphi 0, %s29
      %s49 = sphi 0, %s49
      %s51 = sphi 0, %s49
      %s52 = sphi 0, %s51
      %s66 = sphi 0, %s52
      %s70 = sphi 0, %s70
      %s72 = sphi 0, %s70
      %s73 = sphi 0, %s72
      %s87 = sphi 0, %s73
      %s93 = sphi 0, %s95
      %s96 = sphi 0, %s93
      %s97 = sphi 0, %s96
      %s113 = sphi 0, %s97
    $region4: #{tpu_custom_call.1} parent=1 // loop_header_branch
      %18 = sbr.rel (%p16) target = $region8
    $region5: #{tpu_custom_call.1} parent=1 // loop_body
      %s20 = ssub.s32 %s15, 1
      %s21 = ssub.s32 %s15, 2
      %s22 = sadd.s32 %s15, 1
      %s23 = ssub.s32 %s15, %s22
      %p24 = scmp.eq.s32.totalorder %s23, 0
      %s26 = sadd.s32 %s25, 1
      %s27 = scalar_select %p24, %s25, %s26
      %p30 = pneg %p24
      %p31 = scmp.eq.s32.totalorder %s15, 1
      %p32 = por %p30, %p31
      %p33 = scmp.ne.s32.totalorder %s25, %s28
      %p34 = scmp.eq.s32.totalorder %s15, 0
      %p35 = por %p33, %p34
      %p36 = scmp.ne.s32.totalorder %s25, %s28
      %p37 = scmp.eq.s32.totalorder %s20, 1
      %p38 = por %p36, %p37
      %p39 = scmp.ne.s32.totalorder %s28, %s29
      %p40 = scmp.eq.s32.totalorder %s20, 0
      %p41 = por %p39, %p40
      %p42 = scmp.ne.s32.totalorder %s28, %s29
      %p43 = scmp.eq.s32.totalorder %s21, 1
      %p44 = por %p42, %p43
      %p46 = scmp.ne.s32.totalorder %s29, %s45
      %p47 = scmp.eq.s32.totalorder %s21, 0
      %p48 = por %p46, %p47
      %s50 = sadd.s32 %s49, 1
      %p53 = scmp.eq.s32.totalorder %s15, 1
      %p54 = scmp.ne.s32.totalorder %s49, %s51
      %p55 = scmp.eq.s32.totalorder %s15, 0
      %p56 = por %p54, %p55
      %p57 = scmp.ne.s32.totalorder %s49, %s51
      %p58 = scmp.eq.s32.totalorder %s20, 1
      %p59 = por %p57, %p58
      %p60 = scmp.ne.s32.totalorder %s51, %s52
      %p61 = scmp.eq.s32.totalorder %s20, 0
      %p62 = por %p60, %p61
      %p63 = scmp.ne.s32.totalorder %s51, %s52
      %p64 = scmp.eq.s32.totalorder %s21, 1
      %p65 = por %p63, %p64
      %p67 = scmp.ne.s32.totalorder %s52, %s66
      %p68 = scmp.eq.s32.totalorder %s21, 0
      %p69 = por %p67, %p68
      %s71 = sadd.s32 %s70, 1
      %p74 = scmp.eq.s32.totalorder %s15, 1
      %p75 = scmp.ne.s32.totalorder %s70, %s72
      %p76 = scmp.eq.s32.totalorder %s15, 0
      %p77 = por %p75, %p76
      %p78 = scmp.ne.s32.totalorder %s70, %s72
      %p79 = scmp.eq.s32.totalorder %s20, 1
      %p80 = por %p78, %p79
      %p81 = scmp.ne.s32.totalorder %s72, %s73
      %p82 = scmp.eq.s32.totalorder %s20, 0
      %p83 = por %p81, %p82
      %p84 = scmp.ne.s32.totalorder %s72, %s73
      %p85 = scmp.eq.s32.totalorder %s21, 1
      %p86 = por %p84, %p85
      %p88 = scmp.ne.s32.totalorder %s73, %s87
      %p89 = scmp.eq.s32.totalorder %s21, 0
      %p90 = por %p88, %p89
      %s91 = ssub.s32 %s15, %s22
      %p92 = scmp.eq.s32.totalorder %s91, 0
      %s94 = sadd.s32 %s93, 1
      %s95 = scalar_select %p92, %s93, %s94
      %p98 = pneg %p92
      %p99 = scmp.eq.s32.totalorder %s15, 1
      %p100 = por %p98, %p99
      %p101 = scmp.ne.s32.totalorder %s93, %s96
      %p102 = scmp.eq.s32.totalorder %s15, 0
      %p103 = por %p101, %p102
      %p104 = scmp.ne.s32.totalorder %s93, %s96
      %p105 = scmp.eq.s32.totalorder %s20, 1
      %p106 = por %p104, %p105
      %p107 = scmp.ne.s32.totalorder %s96, %s97
      %p108 = scmp.eq.s32.totalorder %s20, 0
      %p109 = por %p107, %p108
      %p110 = scmp.ne.s32.totalorder %s96, %s97
      %p111 = scmp.eq.s32.totalorder %s21, 1
      %p112 = por %p110, %p111
      %p114 = scmp.ne.s32.totalorder %s97, %s113
      %p115 = scmp.eq.s32.totalorder %s21, 0
      %p116 = por %p114, %p115
      %p117 = scmp.le.s32.totalorder 1, %s15
      %p118 = scmp.lt.s32.totalorder %s15, 3
      %p119 = pnand %p117, %p118
      %p120 = pneg %p119
      // Predicated region
      $region9: #{tpu_custom_call.1} parent=5 // pred_check
        _
      $region10: #{tpu_custom_call.1} parent=5 // pred_check_branch
        %122 = sbr.rel (%p119) target = $region12
      $region11: #{tpu_custom_call.1} parent=5 // pred_region
        %s123 = ssub.s32 %s15, 1
        // Predicated region
        $region13: #{tpu_custom_call.1} parent=11 // pred_check
          %p124 = pneg %p62
        $region14: #{tpu_custom_call.1} parent=11 // pred_check_branch
          %126 = sbr.rel (%p124) target = $region16
        $region15: #{tpu_custom_call.1} parent=11 // pred_region
          _
        $region16: #{tpu_custom_call.1} parent=11 // pred_fallthru
          _
        // Predicated region
        $region17: #{tpu_custom_call.1} parent=11 // pred_check
          %p127 = pneg %p83
        $region18: #{tpu_custom_call.1} parent=11 // pred_check_branch
          %129 = sbr.rel (%p127) target = $region20
        $region19: #{tpu_custom_call.1} parent=11 // pred_region
          _
        $region20: #{tpu_custom_call.1} parent=11 // pred_fallthru
          _
      $region12: #{tpu_custom_call.1} parent=5 // pred_fallthru
        _
      %p130 = scmp.lt.s32.totalorder %s15, 2
      // Predicated region
      $region21: #{tpu_custom_call.1} parent=5 // pred_check
        %p131 = pneg %p130
      $region22: #{tpu_custom_call.1} parent=5 // pred_check_branch
        %133 = sbr.rel (%p131) target = $region24
      $region23: #{tpu_custom_call.1} parent=5 // pred_region
        // Predicated region
        $region25: #{tpu_custom_call.1} parent=23 // pred_check
          %p134 = pneg %p35
        $region26: #{tpu_custom_call.1} parent=23 // pred_check_branch
          %136 = sbr.rel (%p134) target = $region28
        $region27: #{tpu_custom_call.1} parent=23 // pred_region
          %s137 = sand.u32 %s25, 1
          %s138 = scalar_lea.sflag [#allocation3], %s137
          %s139 = sand.u32 %s25, 1
          %s140 = smul.addr %s139, 16
          %s141 = scalar_lea.vmem [#allocation2], %s140
          %s142 = smul.u32 2, %s15
          %s144 = ssub.s32 256, 256
          %145 = vsyncadd %s138, %s144
          %s146 = smul.addr %s142, 128
          %s147 = scalar_lea.hbm %s0, %s146
          %s148 = sshll.u32 %s141, 4
          %s149 = int_to_ptr.vmem [resolvable:$true] %s148
          %154 = dma.hbm_to_vmem [thread:$0]  %s147, 256, %s149, %s138, 128, 128, 8
        $region28: #{tpu_custom_call.1} parent=23 // pred_fallthru
          _
      $region24: #{tpu_custom_call.1} parent=5 // pred_fallthru
        _
      %p155 = scmp.le.s32.totalorder 1, %s15
      %p156 = scmp.lt.s32.totalorder %s15, 3
      %p157 = pnand %p155, %p156
      %p158 = pneg %p157
      // Predicated region
      $region29: #{tpu_custom_call.1} parent=5 // pred_check
        _
      $region30: #{tpu_custom_call.1} parent=5 // pred_check_branch
        %160 = sbr.rel (%p157) target = $region32
      $region31: #{tpu_custom_call.1} parent=5 // pred_region
        %s161 = ssub.s32 %s15, 1
        %s162 = sand.u32 %s28, 1
        %s163 = scalar_lea.sflag [#allocation3], %s162
        %s164 = sand.u32 %s28, 1
        %s165 = smul.addr %s164, 16
        %s166 = scalar_lea.vmem [#allocation2], %s165
        // Predicated region
        $region33: #{tpu_custom_call.1} parent=31 // pred_check
          %p167 = pneg %p41
        $region34: #{tpu_custom_call.1} parent=31 // pred_check_branch
          %169 = sbr.rel (%p167) target = $region36
        $region35: #{tpu_custom_call.1} parent=31 // pred_region
          %170 = dma.done %s163, 256
        $region36: #{tpu_custom_call.1} parent=31 // pred_fallthru
          _
        %s171 = sand.u32 %s28, 1
        %s172 = scalar_lea.sflag [#allocation3], %s171
        %s173 = sand.u32 %s28, 1
        %s174 = smul.addr %s173, 16
        %s175 = scalar_lea.vmem [#allocation2], %s174
        %p176 = pneg %p41
        %p177 = pneg %p38
        %p178 = pneg %p62
        %p179 = pneg %p59
        %p180 = pneg %p83
        %p181 = pneg %p80
        %p182 = pneg %p109
        %p183 = pneg %p106
        %s184 = sand.u32 %s96, 1
        %s185 = scalar_lea.sflag [#allocation4], %s184
        %s186 = sand.u32 %s96, 1
        %s187 = smul.addr %s186, 16
        %s188 = scalar_lea.vmem [#allocation5], %s187
        %s189 = smul.u32 2, %s20
        %s190 = smul.u32 2, %s20
        %v191 = vld [vmem:[%s166] sm:$0xff]
        %v192 = vld [vmem:[%s166 + $0x8] sm:$0xff]
        %v193 = vld [vmem:[%s1] sm:$0x1]
        %v194 = vld [vmem:[%s2] sm:$0x1]
        %vm195 = vcmask 261120
        %v196 = vsel %vm195, %v191, 0.0
        %197 = vadd.xlane.f32.xlu0 %v196
        %v198 = vpop.xlane.xlu0 %197
        %v199 = vsel %vm195, %v192, 0.0
        %200 = vadd.xlane.f32.xlu0 %v199
        %v201 = vpop.xlane.xlu0 %200
        %v202 = vmul.f32 %v191, %v191
        %v203 = vmul.f32 %v192, %v192
        %v204 = vsel %vm195, %v202, 0.0
        %205 = vadd.xlane.f32.xlu0 %v204
        %v206 = vpop.xlane.xlu0 %205
        %v207 = vsel %vm195, %v203, 0.0
        %208 = vadd.xlane.f32.xlu0 %v207
        %v209 = vpop.xlane.xlu0 %208
        %v210 = vmul.f32 %v198, 0.03125
        %v211 = vmul.f32 %v201, 0.03125
        %v212 = vmul.f32 %v206, 0.03125
        %v213 = vmul.f32 %v209, 0.03125
        %v214 = vmul.f32 %v210, %v210
        %v215 = vmul.f32 %v211, %v211
        %v216 = vsub.f32 %v212, %v214
        %v217 = vsub.f32 %v213, %v215
        %v218 = vadd.f32 %v216, 1e-05
        %v219 = vadd.f32 %v217, 1e-05
        %v220 = vrsqrt.pop %v218
        %v221 = vrsqrt.pop %v219
        %v222 = vsub.f32 %v191, %v210
        %v223 = vsub.f32 %v192, %v211
        %v224 = vmul.f32 %v222, %v220
        %v225 = vmul.f32 %v223, %v221
        %v227 = vlaneseq
        %v228 = vshrl.u32 %v227, 7
        %v229 = vsub.s32 0, %v228
        %v230 = vrot.slane %v193, %v229
        %v232 = vmul.f32 %v224, %v230
        %v233 = vmul.f32 %v225, %v230
        %v235 = vlaneseq
        %v236 = vshrl.u32 %v235, 7
        %v237 = vsub.s32 0, %v236
        %v238 = vrot.slane %v194, %v237
        %v240 = vadd.f32 %v232, %v238
        %v241 = vadd.f32 %v233, %v238
        %242 = vst.msk [vmem:[%s188] sm:$0xff] %vm195, %v240
        %243 = vst.msk [vmem:[%s188 + $0x8] sm:$0xff] %vm195, %v241
        %s244 = sand.u32 %s96, 1
        %s245 = scalar_lea.sflag [#allocation4], %s244
        %s246 = sand.u32 %s96, 1
        %s247 = smul.addr %s246, 16
        %s248 = scalar_lea.vmem [#allocation5], %s247
        // Predicated region
        $region37: #{tpu_custom_call.1} parent=31 // pred_check
          %p249 = pneg %p106
        $region38: #{tpu_custom_call.1} parent=31 // pred_check_branch
          %251 = sbr.rel (%p249) target = $region40
        $region39: #{tpu_custom_call.1} parent=31 // pred_region
          %s252 = smul.u32 2, %s20
          %s254 = ssub.s32 256, 256
          %255 = vsyncadd %s245, %s254
          %s256 = smul.addr %s252, 128
          %s257 = scalar_lea.hbm %s3, %s256
          %s258 = sshll.u32 %s248, 4
          %s259 = int_to_ptr.vmem [resolvable:$true] %s258
          %264 = dma.vmem_to_hbm [thread:$0]  %s259, 256, %s257, %s245, 128, 128, 8
        $region40: #{tpu_custom_call.1} parent=31 // pred_fallthru
          _
      $region32: #{tpu_custom_call.1} parent=5 // pred_fallthru
        _
      %p265 = scmp.le.s32.totalorder 2, %s15
      // Predicated region
      $region41: #{tpu_custom_call.1} parent=5 // pred_check
        %p266 = pneg %p265
      $region42: #{tpu_custom_call.1} parent=5 // pred_check_branch
        %268 = sbr.rel (%p266) target = $region44
      $region43: #{tpu_custom_call.1} parent=5 // pred_region
        %s269 = ssub.s32 %s15, 2
        // Predicated region
        $region45: #{tpu_custom_call.1} parent=43 // pred_check
          %p270 = pneg %p112
        $region46: #{tpu_custom_call.1} parent=43 // pred_check_branch
          %272 = sbr.rel (%p270) target = $region48
        $region47: #{tpu_custom_call.1} parent=43 // pred_region
          %s273 = sand.u32 %s97, 1
          %s274 = scalar_lea.sflag [#allocation4], %s273
          %s275 = sand.u32 %s97, 1
          %s276 = smul.addr %s275, 16
          %s277 = scalar_lea.vmem [#allocation5], %s276
          %278 = dma.done %s274, 256
        $region48: #{tpu_custom_call.1} parent=43 // pred_fallthru
          _
      $region44: #{tpu_custom_call.1} parent=5 // pred_fallthru
        _
    $region6: #{tpu_custom_call.1} parent=1 // loop_footer
      %s19 = sadd.s32 1, %s15
    $region7: #{tpu_custom_call.1} parent=1 // loop_footer_branch
      %14 = sbr.rel target = $region3
    $region8: #{tpu_custom_call.1} parent=1 // loop_exit
      _
    %279 = vsyncpa [#allocation3], 1
    %s280 = scalar_lea.sflag [#allocation3], 1
    %281 = vsyncpa %s280, 1
    %282 = vsyncpa [#allocation4], 1
    %s283 = scalar_lea.sflag [#allocation4], 1
    %284 = vsyncpa %s283, 1

</llo_original>
